<compile_context>
chip_gen: v5e
topology: v5e:2x2
jax: 0.10.0
libtpu: 0.0.40
codegen_flags: <defaults>
</compile_context>

<pallas_src>
import functools

import jax
import jax.numpy as jnp
import numpy as np
from jax import lax
from jax.experimental import pallas as pl
from jax.experimental.pallas import tpu as pltpu


# ~2 MiB per (1, TS, D) block.
_TARGET_BLOCK_BYTES = 2 * 1024 * 1024


def _choose_seq_tile(S, D, itemsize):
    """Rows per block so one (1, TS, D) tile is ~2 MiB; multiple of 8, or full S."""
    rows = _TARGET_BLOCK_BYTES // max(1, D * itemsize)
    rows = max(8, rows)
    if rows >= S:
        return S
    return max(8, (rows // 8) * 8)


# ----------------------------- clip_attack kernel -----------------------------
def _clip_kernel(attack_ref, out_ref, *, epsilon):
    a = attack_ref[...].astype(jnp.float32)              # (1, TS, D)
    sumsq = jnp.sum(a * a, axis=-1, keepdims=True)       # (1, TS, 1)  (XLU reduce)
    # scale^-1 = min(eps / ||a||, 1).  rsqrt runs on the EUP (its own VLIW slot)
    # so the wide divide becomes a single VPU multiply.  rsqrt(0)=inf is capped
    # to 1.0 by the min, matching clamp(norm/eps, min=1) for zero-norm rows.
    inv = jnp.minimum(epsilon * lax.rsqrt(sumsq), 1.0)
    out_ref[...] = (a * inv).astype(out_ref.dtype)


def clip_attack(attack, epsilon):
    """Per-token L2 clamp of `attack` to epsilon (GDAdversary.clip_attack)."""
    B, S, D = attack.shape
    ts = _choose_seq_tile(S, D, attack.dtype.itemsize)
    return pl.pallas_call(
        functools.partial(_clip_kernel, epsilon=float(epsilon)),
        out_shape=jax.ShapeDtypeStruct((B, S, D), attack.dtype),
        grid=(B, pl.cdiv(S, ts)),
        in_specs=[pl.BlockSpec((1, ts, D), lambda b, s: (b, s, 0))],
        out_specs=pl.BlockSpec((1, ts, D), lambda b, s: (b, s, 0)),
        input_output_aliases={0: 0},      # in-place div_ semantics
        compiler_params=pltpu.CompilerParams(
            dimension_semantics=("parallel", "parallel")),
    )(attack)


# ------------------------------ forward kernel ---------------------------------
def _forward_kernel(x_ref, attack_ref, mask_ref, out_ref):
    x = x_ref[...]                               # (1, TS, D)
    a = attack_ref[...].astype(x.dtype)          # (1, TS, D)   (.to(x.dtype))
    m = mask_ref[...]                            # (1, TS, 1)   0/1 in x.dtype
    out_ref[...] = x + a * m                     # masked add: one mul + one add


def gd_adversary_forward(x, attack, attack_mask):
    """Functional equivalent of GDAdversary.forward (output aliases x's buffer)."""
    B, S, D = x.shape
    # Early-exit branch: single-token decode step with a multi-token attack.
    if S == 1 and attack.shape[1] != 1:
        return x

    ts = _choose_seq_tile(S, D, x.dtype.itemsize)

    # The [:S] restriction on attack / attack_mask is expressed through the
    # BlockSpec index_map (only row blocks < S are ever DMA'd), so the attack
    # tensor is NOT sliced/copied in HBM.  Only if the (ragged) tile would
    # violate the sublane-divisibility rule (ts == S, S % 8 != 0) do we fall
    # back to a one-off slice so block_shape == full array dims.
    if ts % 8 != 0:
        if attack.shape[1] != S:
            attack = attack[:, :S, :]
        if attack_mask.shape[1] != S:
            attack_mask = attack_mask[:, :S]

    # Mask as (B, S_mask, 1) in x.dtype: tiny side stream next to the (B,S,D)
    # streams, and no per-tile cast inside the kernel.
    mask = attack_mask.astype(x.dtype)[:, :, None]

    return pl.pallas_call(
        _forward_kernel,
        out_shape=jax.ShapeDtypeStruct((B, S, D), x.dtype),
        grid=(B, pl.cdiv(S, ts)),
        in_specs=[
            pl.BlockSpec((1, ts, D), lambda b, s: (b, s, 0)),   # x
            pl.BlockSpec((1, ts, D), lambda b, s: (b, s, 0)),   # attack (rows < S only)
            pl.BlockSpec((1, ts, 1), lambda b, s: (b, s, 0)),   # mask
        ],
        out_specs=pl.BlockSpec((1, ts, D), lambda b, s: (b, s, 0)),
        input_output_aliases={0: 0},      # output reuses x's HBM buffer (x +=)
        compiler_params=pltpu.CompilerParams(
            dimension_semantics=("parallel", "parallel")),
    )(x, attack, mask)


# ----------------------------------- demo --------------------------------------
if __name__ == "__main__":
    B, S, D = 2, 8, 128
    epsilon = 0.5

    key = jax.random.PRNGKey(0)
    kx, ka, km, kx2 = jax.random.split(key, 4)

    x = jax.random.normal(kx, (B, S, D), dtype=jnp.float32)
    # PyTorch initializes the attack to zeros; use non-zero values here so the
    # kernels do observable work, then apply clip_attack exactly as __init__.
    attack_raw = jax.random.normal(ka, (B, S, D), dtype=jnp.float32)
    attack = clip_attack(attack_raw, epsilon)
    attack_mask = jax.random.bernoulli(km, p=0.5, shape=(B, S))     # bool (B, S)

    out = gd_adversary_forward(x, attack, attack_mask)
    out = jax.block_until_ready(out)

    # Plain-JAX reference for both kernels.
    norms = jnp.linalg.norm(attack_raw, axis=-1, keepdims=True)
    attack_ref = attack_raw / jnp.maximum(norms / epsilon, 1.0)
    ref = jnp.where(attack_mask[:, :, None], x + attack_ref, x)
    np.testing.assert_allclose(np.asarray(out), np.asarray(ref), rtol=2e-5, atol=2e-5)

    # Exercise the [:S] slicing path: x shorter than the stored attack/mask.
    S2 = 6
    x2 = jax.random.normal(kx2, (B, S2, D), dtype=jnp.float32)
    out2 = jax.block_until_ready(gd_adversary_forward(x2, attack, attack_mask))
    ref2 = jnp.where(attack_mask[:, :S2, None], x2 + attack_ref[:, :S2], x2)
    np.testing.assert_allclose(np.asarray(out2), np.asarray(ref2), rtol=2e-5, atol=2e-5)

    # Early-exit branch: single-token decode step with a multi-token attack.
    x_dec = x[:, :1, :]
    out3 = gd_adversary_forward(x_dec, attack, attack_mask)
    assert out3 is x_dec

    print("KERNEL_OK")
</pallas_src>

<mosaic_0001>
module attributes {stable_mosaic.version = 11 : i64} {
  func.func @_clip_kernel(%arg0: i32, %arg1: i32, %arg2: memref<1x8x128xf32, #tpu.memory_space<vmem>>, %arg3: memref<1x8x128xf32, #tpu.memory_space<vmem>>) attributes {dimension_semantics = [#tpu.dimension_semantics<parallel>, #tpu.dimension_semantics<parallel>], iteration_bounds = array<i64: 2, 1>, scalar_prefetch = 0 : i64, scratch_operands = 0 : i64, tpu.core_type = #tpu.core_type<tc>, window_params = [{transform_indices = @transform_0, window_bounds = array<i64: 1, 8, 128>}, {transform_indices = @transform_1, window_bounds = array<i64: 1, 8, 128>}]} {
    %c0 = arith.constant 0 : index
    %c0_0 = arith.constant 0 : index
    %c0_1 = arith.constant 0 : index
    %0 = vector.load %arg2[%c0, %c0_0, %c0_1] : memref<1x8x128xf32, #tpu.memory_space<vmem>>, vector<1x8x128xf32>
    %1 = arith.mulf %0, %0 : vector<1x8x128xf32>
    %cst = arith.constant dense<0.000000e+00> : vector<1x8xf32>
    %2 = vector.multi_reduction <add>, %1, %cst [2] : vector<1x8x128xf32> to vector<1x8xf32>
    %3 = vector.shape_cast %2 : vector<1x8xf32> to vector<1x8x1xf32>
    %4 = math.rsqrt %3 : vector<1x8x1xf32>
    %cst_2 = arith.constant 5.000000e-01 : f32
    %5 = vector.broadcast %cst_2 : f32 to vector<1x8x1xf32>
    %6 = arith.mulf %5, %4 : vector<1x8x1xf32>
    %cst_3 = arith.constant 1.000000e+00 : f32
    %7 = vector.broadcast %cst_3 : f32 to vector<1x8x1xf32>
    %8 = arith.minimumf %6, %7 : vector<1x8x1xf32>
    %9 = vector.broadcast %8 : vector<1x8x1xf32> to vector<1x8x128xf32>
    %10 = arith.mulf %0, %9 : vector<1x8x128xf32>
    %c0_4 = arith.constant 0 : index
    %c0_5 = arith.constant 0 : index
    %c0_6 = arith.constant 0 : index
    %11 = vector.load %arg3[%c0_4, %c0_5, %c0_6] : memref<1x8x128xf32, #tpu.memory_space<vmem>>, vector<1x8x128xf32>
    tpu.vector_store %arg3[%c0_4, %c0_5, %c0_6], %10 {strides = array<i32>} : memref<1x8x128xf32, #tpu.memory_space<vmem>>, vector<1x8x128xf32>,
    return
  }
  func.func @transform_0(%arg0: i32, %arg1: i32) -> (i32, i32, i32) {
    %c0_i32 = arith.constant 0 : i32
    %c0_i32_0 = arith.constant 0 : i32
    return %arg0, %arg1, %c0_i32 : i32, i32, i32
  }
  func.func @transform_1(%arg0: i32, %arg1: i32) -> (i32, i32, i32) {
    %c0_i32 = arith.constant 0 : i32
    %c0_i32_0 = arith.constant 0 : i32
    return %arg0, %arg1, %c0_i32 : i32, i32, i32
  }
}

</mosaic_0001>

<llo_original>
// kernel: tpu_custom_call.1
$region0: #{tpu_custom_call.1}
  #allocation0 [shape = 'u32[]', space=smem, size = 0x4, offset = 0x4, fixed_abs, tag = 'smem constant byte address 0x4 - core index']
  #allocation1 [shape = 'u32[72,128]{1,0:T(1,128)}', space=vmem, size = 0x9000, scoped, tag = 'internal scratch']
  %s0 = inlined_call_operand.hbm [shape: f32[2,8,128], index: 0, kind: input, shape index: {}, may-alias: {0,1}]
  %s1 = inlined_call_operand.hbm [shape: f32[2,8,128], index: 1, kind: output, shape index: {}, may-alias: {0,1}]
  %s2 = sld [smem:[#allocation0]]
  $region41: #{tpu_custom_call.1} parent=0
    _
  %s4 = ssub.s32 1, %s2
  %s5 = scalar_select 0, %s4, %s2
  $region1: #{tpu_custom_call.1} parent=0
    #allocation2 [shape = 'u8[8192]{0}', space=vmem, size = 0x2000, scoped, tag = 'input window, operand 0']
    #allocation3 [shape = 's32[2]{0}', space=sflag, size = 0x8, scoped, tag = 'scoped memory for tpu_custom_call.1']
    #allocation4 [shape = 's32[2]{0}', space=sflag, size = 0x8, scoped, tag = 'scoped memory for tpu_custom_call.1']
    #allocation5 [shape = 'u8[8192]{0}', space=vmem, size = 0x2000, scoped, tag = 'output window, operand 0']
    %6 = vsyncpa [#allocation3], 0
    %s7 = scalar_lea.sflag [#allocation3], 1
    %8 = vsyncpa %s7, 0
    %9 = vsyncpa [#allocation4], 0
    %s10 = scalar_lea.sflag [#allocation4], 1
    %11 = vsyncpa %s10, 0
    loop: start=0, step=1, limit=4
    $region2: #{tpu_custom_call.1} parent=1 // loop_pre_header
      _
    $region3: #{tpu_custom_call.1} parent=1 // loop_header
      %s13 = sphi 0, %s17
      %p14 = scmp.ge.s32.totalorder %s13, 4
      %s20 = sphi 0, %s32
      %s21 = sphi 0, %s28
      %s22 = sphi 0, %s20
      %s23 = sphi 0, %s21
      %s24 = sphi 0, %s22
      %s25 = sphi 0, %s23
      %s37 = sphi 0, %s39
      %s40 = sphi 0, %s37
      %s41 = sphi 0, %s40
      %s57 = sphi 0, %s41
      %s65 = sphi 0, %s67
      %s68 = sphi 0, %s65
      %s69 = sphi 0, %s68
      %s85 = sphi 0, %s69
    $region4: #{tpu_custom_call.1} parent=1 // loop_header_branch
      %16 = sbr.rel (%p14) target = $region8
    $region5: #{tpu_custom_call.1} parent=1 // loop_body
      %s18 = ssub.s32 %s13, 1
      %s19 = ssub.s32 %s13, 2
      %s26 = sadd.s32 1, %s21
      %p27 = scmp.ge.s32.totalorder %s26, 1
      %s28 = scalar_select %p27, 0, %s26
      %s29 = sadd.s32 1, %s20
      %s30 = scalar_select %p27, %s29, %s20
      %p31 = scmp.ge.s32.totalorder %s30, 2
      %s32 = scalar_select %p31, 0, %s30
      %s33 = ssub.s32 %s20, %s32
      %s34 = ssub.s32 %s21, %s28
      %s35 = sor.u32 %s33, %s34
      %p36 = scmp.eq.s32.totalorder %s35, 0
      %s38 = sadd.s32 %s37, 1
      %s39 = scalar_select %p36, %s37, %s38
      %p42 = pneg %p36
      %p43 = scmp.eq.s32.totalorder %s13, 1
      %p44 = por %p42, %p43
      %p45 = scmp.ne.s32.totalorder %s37, %s40
      %p46 = scmp.eq.s32.totalorder %s13, 0
      %p47 = por %p45, %p46
      %p48 = scmp.ne.s32.totalorder %s37, %s40
      %p49 = scmp.eq.s32.totalorder %s18, 1
      %p50 = por %p48, %p49
      %p51 = scmp.ne.s32.totalorder %s40, %s41
      %p52 = scmp.eq.s32.totalorder %s18, 0
      %p53 = por %p51, %p52
      %p54 = scmp.ne.s32.totalorder %s40, %s41
      %p55 = scmp.eq.s32.totalorder %s19, 1
      %p56 = por %p54, %p55
      %p58 = scmp.ne.s32.totalorder %s41, %s57
      %p59 = scmp.eq.s32.totalorder %s19, 0
      %p60 = por %p58, %p59
      %s61 = ssub.s32 %s20, %s32
      %s62 = ssub.s32 %s21, %s28
      %s63 = sor.u32 %s61, %s62
      %p64 = scmp.eq.s32.totalorder %s63, 0
      %s66 = sadd.s32 %s65, 1
      %s67 = scalar_select %p64, %s65, %s66
      %p70 = pneg %p64
      %p71 = scmp.eq.s32.totalorder %s13, 1
      %p72 = por %p70, %p71
      %p73 = scmp.ne.s32.totalorder %s65, %s68
      %p74 = scmp.eq.s32.totalorder %s13, 0
      %p75 = por %p73, %p74
      %p76 = scmp.ne.s32.totalorder %s65, %s68
      %p77 = scmp.eq.s32.totalorder %s18, 1
      %p78 = por %p76, %p77
      %p79 = scmp.ne.s32.totalorder %s68, %s69
      %p80 = scmp.eq.s32.totalorder %s18, 0
      %p81 = por %p79, %p80
      %p82 = scmp.ne.s32.totalorder %s68, %s69
      %p83 = scmp.eq.s32.totalorder %s19, 1
      %p84 = por %p82, %p83
      %p86 = scmp.ne.s32.totalorder %s69, %s85
      %p87 = scmp.eq.s32.totalorder %s19, 0
      %p88 = por %p86, %p87
      %p89 = scmp.le.s32.totalorder 1, %s13
      %p90 = scmp.lt.s32.totalorder %s13, 3
      %p91 = pnand %p89, %p90
      %p92 = pneg %p91
      // Predicated region
      $region9: #{tpu_custom_call.1} parent=5 // pred_check
        _
      $region10: #{tpu_custom_call.1} parent=5 // pred_check_branch
        %94 = sbr.rel (%p91) target = $region12
      $region11: #{tpu_custom_call.1} parent=5 // pred_region
        %s95 = ssub.s32 %s13, 1
      $region12: #{tpu_custom_call.1} parent=5 // pred_fallthru
        _
      %p96 = scmp.lt.s32.totalorder %s13, 2
      // Predicated region
      $region13: #{tpu_custom_call.1} parent=5 // pred_check
        %p97 = pneg %p96
      $region14: #{tpu_custom_call.1} parent=5 // pred_check_branch
        %99 = sbr.rel (%p97) target = $region16
      $region15: #{tpu_custom_call.1} parent=5 // pred_region
        // Predicated region
        $region17: #{tpu_custom_call.1} parent=15 // pred_check
          %p100 = pneg %p47
        $region18: #{tpu_custom_call.1} parent=15 // pred_check_branch
          %102 = sbr.rel (%p100) target = $region20
        $region19: #{tpu_custom_call.1} parent=15 // pred_region
          %s103 = sand.u32 %s37, 1
          %s104 = scalar_lea.sflag [#allocation3], %s103
          %s105 = sand.u32 %s37, 1
          %s106 = smul.addr %s105, 8
          %s107 = scalar_lea.vmem [#allocation2], %s106
          %109 = vsyncadd %s104, 0
          %s110 = sadd.s32 %s21, %s20
          %s111 = smul.addr %s110, 8
          %s112 = scalar_lea.hbm %s0, %s111
          %s114 = sshll.u32 %s112, 4
          %s115 = int_to_ptr.hbm [resolvable:$true] %s114
          %s116 = sshll.u32 %s107, 4
          %s117 = int_to_ptr.vmem [resolvable:$true] %s116
          %119 = dma.hbm_to_vmem [thread:$0]  %s115, 128, %s117, %s104
        $region20: #{tpu_custom_call.1} parent=15 // pred_fallthru
          _
      $region16: #{tpu_custom_call.1} parent=5 // pred_fallthru
        _
      %p120 = scmp.le.s32.totalorder 1, %s13
      %p121 = scmp.lt.s32.totalorder %s13, 3
      %p122 = pnand %p120, %p121
      %p123 = pneg %p122
      // Predicated region
      $region21: #{tpu_custom_call.1} parent=5 // pred_check
        _
      $region22: #{tpu_custom_call.1} parent=5 // pred_check_branch
        %125 = sbr.rel (%p122) target = $region24
      $region23: #{tpu_custom_call.1} parent=5 // pred_region
        %s126 = ssub.s32 %s13, 1
        %s127 = sand.u32 %s40, 1
        %s128 = scalar_lea.sflag [#allocation3], %s127
        %s129 = sand.u32 %s40, 1
        %s130 = smul.addr %s129, 8
        %s131 = scalar_lea.vmem [#allocation2], %s130
        // Predicated region
        $region25: #{tpu_custom_call.1} parent=23 // pred_check
          %p132 = pneg %p53
        $region26: #{tpu_custom_call.1} parent=23 // pred_check_branch
          %134 = sbr.rel (%p132) target = $region28
        $region27: #{tpu_custom_call.1} parent=23 // pred_region
          %136 = dma.done %s128, 128
        $region28: #{tpu_custom_call.1} parent=23 // pred_fallthru
          _
        %s137 = sand.u32 %s40, 1
        %s138 = scalar_lea.sflag [#allocation3], %s137
        %s139 = sand.u32 %s40, 1
        %s140 = smul.addr %s139, 8
        %s141 = scalar_lea.vmem [#allocation2], %s140
        %p142 = pneg %p53
        %p143 = pneg %p50
        %p144 = pneg %p81
        %p145 = pneg %p78
        %s146 = sand.u32 %s68, 1
        %s147 = scalar_lea.sflag [#allocation4], %s146
        %s148 = sand.u32 %s68, 1
        %s149 = smul.addr %s148, 8
        %s150 = scalar_lea.vmem [#allocation5], %s149
        %v151 = vld [vmem:[%s131] sm:$0xff]
        %v152 = vmul.f32 %v151, %v151
        %153 = vadd.xlane.f32.xlu0 %v152
        %v154 = vpop.xlane.xlu0 %153
        %v155 = vrsqrt.pop %v154
        %v156 = vmul.f32 %v155, %v154
        %v157 = vmul.f32 %v156, %v155
        %v158 = vmul.f32 0.5, %v157
        %v159 = vsub.f32 1.5, %v158
        %v160 = vmul.f32 %v155, %v159
        %vm161 = vweird.f32 %v154
        %vm162 = vweird.f32 %v155
        %vm163 = vmor %vm161, %vm162
        %v164 = vsel %vm163, %v155, %v160
        %v165 = vmul.f32 %v164, 0.5
        %v166 = vmin.f32 %v165, 1.0
        %v167 = vmul.f32 %v151, %v166
        %168 = vst [vmem:[%s150] sm:$0xff] %v167
        %s169 = sand.u32 %s68, 1
        %s170 = scalar_lea.sflag [#allocation4], %s169
        %s171 = sand.u32 %s68, 1
        %s172 = smul.addr %s171, 8
        %s173 = scalar_lea.vmem [#allocation5], %s172
        // Predicated region
        $region29: #{tpu_custom_call.1} parent=23 // pred_check
          %p174 = pneg %p78
        $region30: #{tpu_custom_call.1} parent=23 // pred_check_branch
          %176 = sbr.rel (%p174) target = $region32
        $region31: #{tpu_custom_call.1} parent=23 // pred_region
          %178 = vsyncadd %s170, 0
          %s179 = sadd.s32 %s23, %s22
          %s180 = smul.addr %s179, 8
          %s181 = scalar_lea.hbm %s1, %s180
          %s183 = sshll.u32 %s173, 4
          %s184 = int_to_ptr.vmem [resolvable:$true] %s183
          %s185 = sshll.u32 %s181, 4
          %s186 = int_to_ptr.hbm [resolvable:$true] %s185
          %188 = dma.vmem_to_hbm [thread:$0]  %s184, 128, %s186, %s170
        $region32: #{tpu_custom_call.1} parent=23 // pred_fallthru
          _
      $region24: #{tpu_custom_call.1} parent=5 // pred_fallthru
        _
      %p189 = scmp.le.s32.totalorder 2, %s13
      // Predicated region
      $region33: #{tpu_custom_call.1} parent=5 // pred_check
        %p190 = pneg %p189
      $region34: #{tpu_custom_call.1} parent=5 // pred_check_branch
        %192 = sbr.rel (%p190) target = $region36
      $region35: #{tpu_custom_call.1} parent=5 // pred_region
        %s193 = ssub.s32 %s13, 2
        // Predicated region
        $region37: #{tpu_custom_call.1} parent=35 // pred_check
          %p194 = pneg %p84
        $region38: #{tpu_custom_call.1} parent=35 // pred_check_branch
          %196 = sbr.rel (%p194) target = $region40
        $region39: #{tpu_custom_call.1} parent=35 // pred_region
          %s197 = sand.u32 %s69, 1
          %s198 = scalar_lea.sflag [#allocation4], %s197
          %s199 = sand.u32 %s69, 1
          %s200 = smul.addr %s199, 8
          %s201 = scalar_lea.vmem [#allocation5], %s200
          %203 = dma.done %s198, 128
        $region40: #{tpu_custom_call.1} parent=35 // pred_fallthru
          _
      $region36: #{tpu_custom_call.1} parent=5 // pred_fallthru
        _
    $region6: #{tpu_custom_call.1} parent=1 // loop_footer
      %s17 = sadd.s32 1, %s13
    $region7: #{tpu_custom_call.1} parent=1 // loop_footer_branch
      %12 = sbr.rel target = $region3
    $region8: #{tpu_custom_call.1} parent=1 // loop_exit
      _
    %204 = vsyncpa [#allocation3], 1
    %s205 = scalar_lea.sflag [#allocation3], 1
    %206 = vsyncpa %s205, 1
    %207 = vsyncpa [#allocation4], 1
    %s208 = scalar_lea.sflag [#allocation4], 1
    %209 = vsyncpa %s208, 1

</llo_original>
